<compile_context>
chip_gen: v5e
topology: v5e:2x2
jax: 0.10.0
libtpu: 0.0.40
codegen_flags: <defaults>
</compile_context>

<pallas_src>
import functools

import jax
import jax.numpy as jnp
from jax.experimental import pallas as pl
from jax.experimental.pallas import tpu as pltpu

_LANES = 128
_SUBLANES = 8
_MAX_BLOCK_ROWS = 2048   # 2048 x 128 x 4B = 1 MiB per f32 input block
_NUM_SPLITS = 2          # partials for the (up to) 2 TensorCores of a chip


def _uc_loss_kernel(gt_ref, mu_ref, th_ref, out_ref, acc_ref, *,
                    block_rows, rows_total, need_mask):
    i = pl.program_id(1)

    @pl.when(i == 0)
    def _():
        acc_ref[...] = jnp.zeros_like(acc_ref)

    gt = gt_ref[...].astype(jnp.float32)
    mu = mu_ref[...].astype(jnp.float32)
    th = th_ref[...].astype(jnp.float32)
    diff = gt - mu

    if need_mask:
        # Mask rows past the true (padded-to-8) row count: covers both the
        # partial last block and fully-out-of-range (clamped) blocks.
        logical_block = pl.program_id(0) * pl.num_programs(1) + i
        row0 = logical_block * block_rows
        rid = jax.lax.broadcasted_iota(jnp.int32, (block_rows, _LANES), 0) + row0
        mask = rid < rows_total
        diff = jnp.where(mask, diff, 0.0)
        th = jnp.where(mask, th, 0.0)

    # diff^2 * 1/(1e-6 + 2*exp(theta)) + theta
    val = diff * diff * pl.reciprocal(1e-6 + 2.0 * jnp.exp(th), approx=False) + th

    # Reduce the block to an (8, 128) partial with pure VPU adds (the reshape
    # splits the leading dim exactly on (8,128) tile boundaries).
    acc_ref[...] += val.reshape(block_rows // _SUBLANES, _SUBLANES, _LANES).sum(axis=0)

    @pl.when(i == pl.num_programs(1) - 1)
    def _():
        out_ref[0] = acc_ref[...]


def _prep(x):
    """Flatten to a (rows, 128) lane-dense slab, rows a multiple of 8."""
    x = jnp.asarray(x)
    if not jnp.issubdtype(x.dtype, jnp.floating):
        x = x.astype(jnp.float32)
    flat = x.reshape(-1)
    n = flat.shape[0]
    block = _SUBLANES * _LANES
    padded = ((n + block - 1) // block) * block
    if padded != n:
        # TODO(synk): this pad is an extra HBM copy; only hit when size % 1024 != 0.
        flat = jnp.pad(flat, (0, padded - n))
    return flat.reshape(padded // _LANES, _LANES)


def uc_loss(gt, mu, theta):
    """Pallas-backed equivalent of the PyTorch uc_loss.forward."""
    n = int(gt.size)

    g = _prep(gt)
    m = _prep(mu)
    t = _prep(theta)

    rows = g.shape[0]                                # multiple of 8
    block_rows = min(_MAX_BLOCK_ROWS, rows)          # multiple of 8, <= rows
    num_blocks = pl.cdiv(rows, block_rows)
    bpc = pl.cdiv(num_blocks, _NUM_SPLITS)           # blocks per core-split
    need_mask = (_NUM_SPLITS * bpc * block_rows) != rows

    kernel = functools.partial(
        _uc_loss_kernel,
        block_rows=block_rows,
        rows_total=rows,
        need_mask=need_mask,
    )

    def in_map(c, i):
        # Clamp so any extra trailing block never DMAs out of range; its
        # contribution is zeroed by the in-kernel mask.
        return (jnp.minimum(c * bpc + i, num_blocks - 1), 0)

    in_spec = pl.BlockSpec((block_rows, _LANES), in_map)

    bytes_per_elem = (g.dtype.itemsize + m.dtype.itemsize + t.dtype.itemsize)
    cost = pl.CostEstimate(
        flops=7 * n,
        transcendentals=n,
        bytes_accessed=n * bytes_per_elem + _NUM_SPLITS * _SUBLANES * _LANES * 4,
    )

    partials = pl.pallas_call(
        kernel,
        out_shape=jax.ShapeDtypeStruct((_NUM_SPLITS, _SUBLANES, _LANES), jnp.float32),
        grid_spec=pltpu.PrefetchScalarGridSpec(
            num_scalar_prefetch=0,
            grid=(_NUM_SPLITS, bpc),
            in_specs=[in_spec, in_spec, in_spec],
            out_specs=pl.BlockSpec((1, _SUBLANES, _LANES), lambda c, i: (c, 0, 0)),
            scratch_shapes=[pltpu.VMEM((_SUBLANES, _LANES), jnp.float32)],
        ),
        compiler_params=pltpu.CompilerParams(
            dimension_semantics=("parallel", "arbitrary"),
        ),
        cost_estimate=cost,
    )(g, m, t)

    # Single cross-lane/sublane reduction (tiny: 2 x 8 x 128 floats) + mean.
    return jnp.sum(partials) / n


def uc_loss_ref(gt, mu, theta):
    gt = jnp.asarray(gt, jnp.float32)
    mu = jnp.asarray(mu, jnp.float32)
    theta = jnp.asarray(theta, jnp.float32)
    return jnp.mean((gt - mu) ** 2 / (1e-06 + 2.0 * jnp.exp(theta)) + theta)


if __name__ == "__main__":
    key = jax.random.PRNGKey(0)
    k1, k2, k3 = jax.random.split(key, 3)

    # NCHW inputs, small shapes
    shape = (2, 4, 16, 16)
    gt = jax.random.normal(k1, shape, dtype=jnp.float32)
    mu = jax.random.normal(k2, shape, dtype=jnp.float32)
    theta = 0.5 * jax.random.normal(k3, shape, dtype=jnp.float32)

    out = uc_loss(gt, mu, theta)
    out = jax.block_until_ready(out)

    ref = uc_loss_ref(gt, mu, theta)
    assert jnp.allclose(out, ref, rtol=1e-5, atol=1e-6), (out, ref)

    print("KERNEL_OK")
</pallas_src>

<mosaic_0001>
module attributes {stable_mosaic.version = 11 : i64} {
  func.func @_uc_loss_kernel(%arg0: i32, %arg1: i32, %arg2: memref<16x128xf32, #tpu.memory_space<vmem>>, %arg3: memref<16x128xf32, #tpu.memory_space<vmem>>, %arg4: memref<16x128xf32, #tpu.memory_space<vmem>>, %arg5: memref<1x8x128xf32, #tpu.memory_space<vmem>>, %arg6: memref<8x128xf32, #tpu.memory_space<vmem>>) attributes {dimension_semantics = [#tpu.dimension_semantics<parallel>, #tpu.dimension_semantics<arbitrary>], iteration_bounds = array<i64: 2, 1>, scalar_prefetch = 0 : i64, scratch_operands = 1 : i64, tpu.core_type = #tpu.core_type<tc>, window_params = [{transform_indices = @transform_0, window_bounds = array<i64: 16, 128>}, {transform_indices = @transform_1, window_bounds = array<i64: 16, 128>}, {transform_indices = @transform_2, window_bounds = array<i64: 16, 128>}, {transform_indices = @transform_3, window_bounds = array<i64: 1, 8, 128>}]} {
    %c0_i32 = arith.constant 0 : i32
    %0 = arith.cmpi eq, %arg1, %c0_i32 : i32
    %1 = arith.extui %0 : i1 to i32
    %c0_i32_0 = arith.constant 0 : i32
    %2 = arith.cmpi ne, %1, %c0_i32_0 : i32
    scf.if %2 {
      %cst_17 = arith.constant 0.000000e+00 : f32
      %36 = vector.broadcast %cst_17 : f32 to vector<8x128xf32>
      %c0_18 = arith.constant 0 : index
      %c0_19 = arith.constant 0 : index
      %37 = vector.load %arg6[%c0_18, %c0_19] : memref<8x128xf32, #tpu.memory_space<vmem>>, vector<8x128xf32>
      tpu.vector_store %arg6[%c0_18, %c0_19], %36 {strides = array<i32>} : memref<8x128xf32, #tpu.memory_space<vmem>>, vector<8x128xf32>,
    } else {
    }
    %c0 = arith.constant 0 : index
    %c0_1 = arith.constant 0 : index
    %3 = vector.load %arg2[%c0, %c0_1] : memref<16x128xf32, #tpu.memory_space<vmem>>, vector<16x128xf32>
    %c0_2 = arith.constant 0 : index
    %c0_3 = arith.constant 0 : index
    %4 = vector.load %arg3[%c0_2, %c0_3] : memref<16x128xf32, #tpu.memory_space<vmem>>, vector<16x128xf32>
    %c0_4 = arith.constant 0 : index
    %c0_5 = arith.constant 0 : index
    %5 = vector.load %arg4[%c0_4, %c0_5] : memref<16x128xf32, #tpu.memory_space<vmem>>, vector<16x128xf32>
    %6 = arith.subf %3, %4 : vector<16x128xf32>
    %c1_i32 = arith.constant 1 : i32
    %7 = arith.muli %arg0, %c1_i32 : i32
    %8 = arith.addi %7, %arg1 : i32
    %c16_i32 = arith.constant 16 : i32
    %9 = arith.muli %8, %c16_i32 : i32
    %10 = tpu.iota {dimensions = array<i32: 0>} : vector<16x128xi32>
    %11 = vector.broadcast %9 : i32 to vector<16x128xi32>
    %12 = arith.addi %10, %11 : vector<16x128xi32>
    %c16_i32_6 = arith.constant 16 : i32
    %13 = vector.broadcast %c16_i32_6 : i32 to vector<16x128xi32>
    %14 = arith.cmpi slt, %12, %13 : vector<16x128xi32>
    %cst = arith.constant 0.000000e+00 : f32
    %15 = vector.broadcast %cst : f32 to vector<16x128xf32>
    %16 = arith.select %14, %6, %15 : vector<16x128xi1>, vector<16x128xf32>
    %cst_7 = arith.constant 0.000000e+00 : f32
    %17 = vector.broadcast %cst_7 : f32 to vector<16x128xf32>
    %18 = arith.select %14, %5, %17 : vector<16x128xi1>, vector<16x128xf32>
    %19 = arith.mulf %16, %16 : vector<16x128xf32>
    %20 = math.exp %18 : vector<16x128xf32>
    %cst_8 = arith.constant 2.000000e+00 : f32
    %21 = vector.broadcast %cst_8 : f32 to vector<16x128xf32>
    %22 = arith.mulf %21, %20 : vector<16x128xf32>
    %cst_9 = arith.constant 9.99999997E-7 : f32
    %23 = vector.broadcast %cst_9 : f32 to vector<16x128xf32>
    %24 = arith.addf %23, %22 : vector<16x128xf32>
    %25 = tpu.reciprocal %24 : vector<16x128xf32> -> vector<16x128xf32>
    %26 = arith.mulf %19, %25 : vector<16x128xf32>
    %27 = arith.addf %26, %18 : vector<16x128xf32>
    %c0_10 = arith.constant 0 : index
    %c0_11 = arith.constant 0 : index
    %28 = vector.load %arg6[%c0_10, %c0_11] : memref<8x128xf32, #tpu.memory_space<vmem>>, vector<8x128xf32>
    %29 = vector.shape_cast %27 : vector<16x128xf32> to vector<2x8x128xf32>
    %cst_12 = arith.constant dense<0.000000e+00> : vector<8x128xf32>
    %30 = vector.multi_reduction <add>, %29, %cst_12 [0] : vector<2x8x128xf32> to vector<8x128xf32>
    %31 = arith.addf %28, %30 : vector<8x128xf32>
    %c0_13 = arith.constant 0 : index
    %c0_14 = arith.constant 0 : index
    %32 = vector.load %arg6[%c0_13, %c0_14] : memref<8x128xf32, #tpu.memory_space<vmem>>, vector<8x128xf32>
    tpu.vector_store %arg6[%c0_13, %c0_14], %31 {strides = array<i32>} : memref<8x128xf32, #tpu.memory_space<vmem>>, vector<8x128xf32>,
    %c0_i32_15 = arith.constant 0 : i32
    %33 = arith.cmpi eq, %arg1, %c0_i32_15 : i32
    %34 = arith.extui %33 : i1 to i32
    %c0_i32_16 = arith.constant 0 : i32
    %35 = arith.cmpi ne, %34, %c0_i32_16 : i32
    scf.if %35 {
      %c0_17 = arith.constant 0 : index
      %c0_18 = arith.constant 0 : index
      %36 = vector.load %arg6[%c0_17, %c0_18] : memref<8x128xf32, #tpu.memory_space<vmem>>, vector<8x128xf32>
      %c0_19 = arith.constant 0 : index
      %c0_20 = arith.constant 0 : index
      %c0_21 = arith.constant 0 : index
      %37 = vector.load %arg5[%c0_19, %c0_20, %c0_21] : memref<1x8x128xf32, #tpu.memory_space<vmem>>, vector<1x8x128xf32>
      %38 = vector.shape_cast %37 : vector<1x8x128xf32> to vector<8x128xf32>
      %39 = vector.shape_cast %36 : vector<8x128xf32> to vector<1x8x128xf32>
      tpu.vector_store %arg5[%c0_19, %c0_20, %c0_21], %39 {strides = array<i32>} : memref<1x8x128xf32, #tpu.memory_space<vmem>>, vector<1x8x128xf32>,
    } else {
    }
    return
  }
  func.func @transform_0(%arg0: i32, %arg1: i32) -> (i32, i32) {
    %c1_i32 = arith.constant 1 : i32
    %0 = arith.muli %arg0, %c1_i32 : i32
    %1 = arith.addi %0, %arg1 : i32
    %c0_i32 = arith.constant 0 : i32
    %2 = arith.minsi %1, %c0_i32 : i32
    %c0_i32_0 = arith.constant 0 : i32
    %c0_i32_1 = arith.constant 0 : i32
    return %2, %c0_i32_0 : i32, i32
  }
  func.func @transform_1(%arg0: i32, %arg1: i32) -> (i32, i32) {
    %c1_i32 = arith.constant 1 : i32
    %0 = arith.muli %arg0, %c1_i32 : i32
    %1 = arith.addi %0, %arg1 : i32
    %c0_i32 = arith.constant 0 : i32
    %2 = arith.minsi %1, %c0_i32 : i32
    %c0_i32_0 = arith.constant 0 : i32
    %c0_i32_1 = arith.constant 0 : i32
    return %2, %c0_i32_0 : i32, i32
  }
  func.func @transform_2(%arg0: i32, %arg1: i32) -> (i32, i32) {
    %c1_i32 = arith.constant 1 : i32
    %0 = arith.muli %arg0, %c1_i32 : i32
    %1 = arith.addi %0, %arg1 : i32
    %c0_i32 = arith.constant 0 : i32
    %2 = arith.minsi %1, %c0_i32 : i32
    %c0_i32_0 = arith.constant 0 : i32
    %c0_i32_1 = arith.constant 0 : i32
    return %2, %c0_i32_0 : i32, i32
  }
  func.func @transform_3(%arg0: i32, %arg1: i32) -> (i32, i32, i32) {
    %c0_i32 = arith.constant 0 : i32
    %c0_i32_0 = arith.constant 0 : i32
    %c0_i32_1 = arith.constant 0 : i32
    return %arg0, %c0_i32, %c0_i32_0 : i32, i32, i32
  }
}

</mosaic_0001>

<llo_original>
// kernel: tpu_custom_call.1
$region0: #{tpu_custom_call.1}
  #allocation0 [shape = 'u32[]', space=smem, size = 0x4, offset = 0x4, fixed_abs, tag = 'smem constant byte address 0x4 - core index']
  #allocation1 [shape = 'u32[72,128]{1,0:T(1,128)}', space=vmem, size = 0x9000, scoped, tag = 'internal scratch']
  #allocation2 [shape = 'f32[8,128]{1,0:T(8,128)}', space=vmem, size = 0x1000, scoped, tag = 'scratch operand']
  %s0 = inlined_call_operand.hbm [shape: f32[16,128], index: 0, kind: input, shape index: {}]
  %s1 = inlined_call_operand.hbm [shape: f32[16,128], index: 1, kind: input, shape index: {}]
  %s2 = inlined_call_operand.hbm [shape: f32[16,128], index: 2, kind: input, shape index: {}]
  %s3 = inlined_call_operand.hbm [shape: f32[2,8,128], index: 3, kind: output, shape index: {}]
  %s4 = sld [smem:[#allocation0]]
  $region65: #{tpu_custom_call.1} parent=0
    _
  %s6 = ssub.s32 1, %s4
  %s7 = scalar_select 0, %s6, %s4
  $region1: #{tpu_custom_call.1} parent=0
    #allocation3 [shape = 'u8[16384]{0}', space=vmem, size = 0x4000, scoped, tag = 'input window, operand 0']
    #allocation4 [shape = 's32[2]{0}', space=sflag, size = 0x8, scoped, tag = 'scoped memory for tpu_custom_call.1']
    #allocation5 [shape = 's32[2]{0}', space=sflag, size = 0x8, scoped, tag = 'scoped memory for tpu_custom_call.1']
    #allocation6 [shape = 'u8[16384]{0}', space=vmem, size = 0x4000, scoped, tag = 'input window, operand 1']
    #allocation7 [shape = 's32[2]{0}', space=sflag, size = 0x8, scoped, tag = 'scoped memory for tpu_custom_call.1']
    #allocation8 [shape = 'u8[16384]{0}', space=vmem, size = 0x4000, scoped, tag = 'input window, operand 2']
    #allocation9 [shape = 'u8[8192]{0}', space=vmem, size = 0x2000, scoped, tag = 'output window, operand 0']
    %8 = vsyncpa [#allocation4], 0
    %s9 = scalar_lea.sflag [#allocation4], 1
    %10 = vsyncpa %s9, 0
    %11 = vsyncpa [#allocation7], 0
    %s12 = scalar_lea.sflag [#allocation7], 1
    %13 = vsyncpa %s12, 0
    %14 = vsyncpa [#allocation5], 0
    %s15 = scalar_lea.sflag [#allocation5], 1
    %16 = vsyncpa %s15, 0
    loop: start=0, step=1, limit=4
    $region2: #{tpu_custom_call.1} parent=1 // loop_pre_header
      _
    $region3: #{tpu_custom_call.1} parent=1 // loop_header
      %s18 = sphi 0, %s22
      %p19 = scmp.ge.s32.totalorder %s18, 4
      %s25 = sphi 0, %s37
      %s26 = sphi 0, %s33
      %s27 = sphi 0, %s25
      %s28 = sphi 0, %s26
      %s29 = sphi 0, %s27
      %s30 = sphi 0, %s28
      %s46 = sphi 0, %s48
      %s49 = sphi 0, %s46
      %s50 = sphi 0, %s49
      %s66 = sphi 0, %s50
      %s78 = sphi 0, %s80
      %s81 = sphi 0, %s78
      %s82 = sphi 0, %s81
      %s98 = sphi 0, %s82
      %s110 = sphi 0, %s112
      %s113 = sphi 0, %s110
      %s114 = sphi 0, %s113
      %s130 = sphi 0, %s114
      %s136 = sphi 0, %s138
      %s139 = sphi 0, %s136
      %s140 = sphi 0, %s139
      %s156 = sphi 0, %s140
    $region4: #{tpu_custom_call.1} parent=1 // loop_header_branch
      %21 = sbr.rel (%p19) target = $region8
    $region5: #{tpu_custom_call.1} parent=1 // loop_body
      %s23 = ssub.s32 %s18, 1
      %s24 = ssub.s32 %s18, 2
      %s31 = sadd.s32 1, %s26
      %p32 = scmp.ge.s32.totalorder %s31, 1
      %s33 = scalar_select %p32, 0, %s31
      %s34 = sadd.s32 1, %s25
      %s35 = scalar_select %p32, %s34, %s25
      %p36 = scmp.ge.s32.totalorder %s35, 2
      %s37 = scalar_select %p36, 0, %s35
      %s38 = sadd.s32 %s25, %s26
      %p39 = scmp.lt.s32.totalorder %s38, 0
      %s40 = scalar_select %p39, %s38, 0
      %s41 = sadd.s32 %s37, %s33
      %p42 = scmp.lt.s32.totalorder %s41, 0
      %s43 = scalar_select %p42, %s41, 0
      %s44 = ssub.s32 %s40, %s43
      %p45 = scmp.eq.s32.totalorder %s44, 0
      %s47 = sadd.s32 %s46, 1
      %s48 = scalar_select %p45, %s46, %s47
      %p51 = pneg %p45
      %p52 = scmp.eq.s32.totalorder %s18, 1
      %p53 = por %p51, %p52
      %p54 = scmp.ne.s32.totalorder %s46, %s49
      %p55 = scmp.eq.s32.totalorder %s18, 0
      %p56 = por %p54, %p55
      %p57 = scmp.ne.s32.totalorder %s46, %s49
      %p58 = scmp.eq.s32.totalorder %s23, 1
      %p59 = por %p57, %p58
      %p60 = scmp.ne.s32.totalorder %s49, %s50
      %p61 = scmp.eq.s32.totalorder %s23, 0
      %p62 = por %p60, %p61
      %p63 = scmp.ne.s32.totalorder %s49, %s50
      %p64 = scmp.eq.s32.totalorder %s24, 1
      %p65 = por %p63, %p64
      %p67 = scmp.ne.s32.totalorder %s50, %s66
      %p68 = scmp.eq.s32.totalorder %s24, 0
      %p69 = por %p67, %p68
      %s70 = sadd.s32 %s25, %s26
      %p71 = scmp.lt.s32.totalorder %s70, 0
      %s72 = scalar_select %p71, %s70, 0
      %s73 = sadd.s32 %s37, %s33
      %p74 = scmp.lt.s32.totalorder %s73, 0
      %s75 = scalar_select %p74, %s73, 0
      %s76 = ssub.s32 %s72, %s75
      %p77 = scmp.eq.s32.totalorder %s76, 0
      %s79 = sadd.s32 %s78, 1
      %s80 = scalar_select %p77, %s78, %s79
      %p83 = pneg %p77
      %p84 = scmp.eq.s32.totalorder %s18, 1
      %p85 = por %p83, %p84
      %p86 = scmp.ne.s32.totalorder %s78, %s81
      %p87 = scmp.eq.s32.totalorder %s18, 0
      %p88 = por %p86, %p87
      %p89 = scmp.ne.s32.totalorder %s78, %s81
      %p90 = scmp.eq.s32.totalorder %s23, 1
      %p91 = por %p89, %p90
      %p92 = scmp.ne.s32.totalorder %s81, %s82
      %p93 = scmp.eq.s32.totalorder %s23, 0
      %p94 = por %p92, %p93
      %p95 = scmp.ne.s32.totalorder %s81, %s82
      %p96 = scmp.eq.s32.totalorder %s24, 1
      %p97 = por %p95, %p96
      %p99 = scmp.ne.s32.totalorder %s82, %s98
      %p100 = scmp.eq.s32.totalorder %s24, 0
      %p101 = por %p99, %p100
      %s102 = sadd.s32 %s25, %s26
      %p103 = scmp.lt.s32.totalorder %s102, 0
      %s104 = scalar_select %p103, %s102, 0
      %s105 = sadd.s32 %s37, %s33
      %p106 = scmp.lt.s32.totalorder %s105, 0
      %s107 = scalar_select %p106, %s105, 0
      %s108 = ssub.s32 %s104, %s107
      %p109 = scmp.eq.s32.totalorder %s108, 0
      %s111 = sadd.s32 %s110, 1
      %s112 = scalar_select %p109, %s110, %s111
      %p115 = pneg %p109
      %p116 = scmp.eq.s32.totalorder %s18, 1
      %p117 = por %p115, %p116
      %p118 = scmp.ne.s32.totalorder %s110, %s113
      %p119 = scmp.eq.s32.totalorder %s18, 0
      %p120 = por %p118, %p119
      %p121 = scmp.ne.s32.totalorder %s110, %s113
      %p122 = scmp.eq.s32.totalorder %s23, 1
      %p123 = por %p121, %p122
      %p124 = scmp.ne.s32.totalorder %s113, %s114
      %p125 = scmp.eq.s32.totalorder %s23, 0
      %p126 = por %p124, %p125
      %p127 = scmp.ne.s32.totalorder %s113, %s114
      %p128 = scmp.eq.s32.totalorder %s24, 1
      %p129 = por %p127, %p128
      %p131 = scmp.ne.s32.totalorder %s114, %s130
      %p132 = scmp.eq.s32.totalorder %s24, 0
      %p133 = por %p131, %p132
      %s134 = ssub.s32 %s25, %s37
      %p135 = scmp.eq.s32.totalorder %s134, 0
      %s137 = sadd.s32 %s136, 1
      %s138 = scalar_select %p135, %s136, %s137
      %p141 = pneg %p135
      %p142 = scmp.eq.s32.totalorder %s18, 1
      %p143 = por %p141, %p142
      %p144 = scmp.ne.s32.totalorder %s136, %s139
      %p145 = scmp.eq.s32.totalorder %s18, 0
      %p146 = por %p144, %p145
      %p147 = scmp.ne.s32.totalorder %s136, %s139
      %p148 = scmp.eq.s32.totalorder %s23, 1
      %p149 = por %p147, %p148
      %p150 = scmp.ne.s32.totalorder %s139, %s140
      %p151 = scmp.eq.s32.totalorder %s23, 0
      %p152 = por %p150, %p151
      %p153 = scmp.ne.s32.totalorder %s139, %s140
      %p154 = scmp.eq.s32.totalorder %s24, 1
      %p155 = por %p153, %p154
      %p157 = scmp.ne.s32.totalorder %s140, %s156
      %p158 = scmp.eq.s32.totalorder %s24, 0
      %p159 = por %p157, %p158
      %p160 = scmp.le.s32.totalorder 1, %s18
      %p161 = scmp.lt.s32.totalorder %s18, 3
      %p162 = pnand %p160, %p161
      %p163 = pneg %p162
      // Predicated region
      $region9: #{tpu_custom_call.1} parent=5 // pred_check
        _
      $region10: #{tpu_custom_call.1} parent=5 // pred_check_branch
        %165 = sbr.rel (%p162) target = $region12
      $region11: #{tpu_custom_call.1} parent=5 // pred_region
        %s166 = ssub.s32 %s18, 1
      $region12: #{tpu_custom_call.1} parent=5 // pred_fallthru
        _
      %p167 = scmp.lt.s32.totalorder %s18, 2
      // Predicated region
      $region13: #{tpu_custom_call.1} parent=5 // pred_check
        %p168 = pneg %p167
      $region14: #{tpu_custom_call.1} parent=5 // pred_check_branch
        %170 = sbr.rel (%p168) target = $region16
      $region15: #{tpu_custom_call.1} parent=5 // pred_region
        // Predicated region
        $region17: #{tpu_custom_call.1} parent=15 // pred_check
          %p171 = pneg %p56
        $region18: #{tpu_custom_call.1} parent=15 // pred_check_branch
          %173 = sbr.rel (%p171) target = $region20
        $region19: #{tpu_custom_call.1} parent=15 // pred_region
          %s174 = sand.u32 %s46, 1
          %s175 = scalar_lea.sflag [#allocation4], %s174
          %s176 = sand.u32 %s46, 1
          %s177 = smul.addr %s176, 16
          %s178 = scalar_lea.vmem [#allocation3], %s177
          %s179 = sadd.s32 %s25, %s26
          %p180 = scmp.lt.s32.totalorder %s179, 0
          %s181 = scalar_select %p180, %s179, 0
          %s182 = smul.u32 2, %s181
          %184 = vsyncadd %s175, 0
          %s185 = smul.addr %s182, 8
          %s186 = scalar_lea.hbm %s0, %s185
          %s187 = sshll.u32 %s186, 4
          %s188 = int_to_ptr.hbm [resolvable:$true] %s187
          %s189 = sshll.u32 %s178, 4
          %s190 = int_to_ptr.vmem [resolvable:$true] %s189
          %195 = dma.hbm_to_vmem [thread:$0]  %s188, 256, %s190, %s175, 128, 128, 8
        $region20: #{tpu_custom_call.1} parent=15 // pred_fallthru
          _
        // Predicated region
        $region21: #{tpu_custom_call.1} parent=15 // pred_check
          %p196 = pneg %p88
        $region22: #{tpu_custom_call.1} parent=15 // pred_check_branch
          %198 = sbr.rel (%p196) target = $region24
        $region23: #{tpu_custom_call.1} parent=15 // pred_region
          %s199 = sand.u32 %s18, 1
          %s200 = scalar_lea.sflag [#allocation7], %s199
          %s201 = sand.u32 %s78, 1
          %s202 = smul.addr %s201, 16
          %s203 = scalar_lea.vmem [#allocation6], %s202
          %s204 = sadd.s32 %s25, %s26
          %p205 = scmp.lt.s32.totalorder %s204, 0
          %s206 = scalar_select %p205, %s204, 0
          %s207 = smul.u32 2, %s206
          %209 = vsyncadd %s200, 0
          %s210 = smul.addr %s207, 8
          %s211 = scalar_lea.hbm %s1, %s210
          %s212 = sshll.u32 %s211, 4
          %s213 = int_to_ptr.hbm [resolvable:$true] %s212
          %s214 = sshll.u32 %s203, 4
          %s215 = int_to_ptr.vmem [resolvable:$true] %s214
          %220 = dma.hbm_to_vmem [thread:$0]  %s213, 256, %s215, %s200, 128, 128, 8
        $region24: #{tpu_custom_call.1} parent=15 // pred_fallthru
          _
        // Predicated region
        $region25: #{tpu_custom_call.1} parent=15 // pred_check
          %p221 = pneg %p120
        $region26: #{tpu_custom_call.1} parent=15 // pred_check_branch
          %223 = sbr.rel (%p221) target = $region28
        $region27: #{tpu_custom_call.1} parent=15 // pred_region
          %s224 = sand.u32 %s18, 1
          %s225 = scalar_lea.sflag [#allocation7], %s224
          %s226 = sand.u32 %s110, 1
          %s227 = smul.addr %s226, 16
          %s228 = scalar_lea.vmem [#allocation8], %s227
          %s229 = sadd.s32 %s25, %s26
          %p230 = scmp.lt.s32.totalorder %s229, 0
          %s231 = scalar_select %p230, %s229, 0
          %s232 = smul.u32 2, %s231
          %234 = vsyncadd %s225, 0
          %s235 = smul.addr %s232, 8
          %s236 = scalar_lea.hbm %s2, %s235
          %s237 = sshll.u32 %s236, 4
          %s238 = int_to_ptr.hbm [resolvable:$true] %s237
          %s239 = sshll.u32 %s228, 4
          %s240 = int_to_ptr.vmem [resolvable:$true] %s239
          %245 = dma.hbm_to_vmem [thread:$0]  %s238, 256, %s240, %s225, 128, 128, 8
        $region28: #{tpu_custom_call.1} parent=15 // pred_fallthru
          _
      $region16: #{tpu_custom_call.1} parent=5 // pred_fallthru
        _
      %p246 = scmp.le.s32.totalorder 1, %s18
      %p247 = scmp.lt.s32.totalorder %s18, 3
      %p248 = pnand %p246, %p247
      %p249 = pneg %p248
      // Predicated region
      $region29: #{tpu_custom_call.1} parent=5 // pred_check
        _
      $region30: #{tpu_custom_call.1} parent=5 // pred_check_branch
        %251 = sbr.rel (%p248) target = $region32
      $region31: #{tpu_custom_call.1} parent=5 // pred_region
        %s252 = ssub.s32 %s18, 1
        %s253 = sand.u32 %s49, 1
        %s254 = scalar_lea.sflag [#allocation4], %s253
        %s255 = sand.u32 %s49, 1
        %s256 = smul.addr %s255, 16
        %s257 = scalar_lea.vmem [#allocation3], %s256
        // Predicated region
        $region33: #{tpu_custom_call.1} parent=31 // pred_check
          %p258 = pneg %p62
        $region34: #{tpu_custom_call.1} parent=31 // pred_check_branch
          %260 = sbr.rel (%p258) target = $region36
        $region35: #{tpu_custom_call.1} parent=31 // pred_region
          %262 = dma.done %s254, 256
        $region36: #{tpu_custom_call.1} parent=31 // pred_fallthru
          _
        %s263 = sand.u32 %s23, 1
        %s264 = scalar_lea.sflag [#allocation7], %s263
        %s265 = sand.u32 %s81, 1
        %s266 = smul.addr %s265, 16
        %s267 = scalar_lea.vmem [#allocation6], %s266
        // Predicated region
        $region37: #{tpu_custom_call.1} parent=31 // pred_check
          %p268 = pneg %p94
        $region38: #{tpu_custom_call.1} parent=31 // pred_check_branch
          %270 = sbr.rel (%p268) target = $region40
        $region39: #{tpu_custom_call.1} parent=31 // pred_region
          %272 = dma.done %s264, 256
        $region40: #{tpu_custom_call.1} parent=31 // pred_fallthru
          _
        %s273 = sand.u32 %s23, 1
        %s274 = scalar_lea.sflag [#allocation7], %s273
        %s275 = sand.u32 %s113, 1
        %s276 = smul.addr %s275, 16
        %s277 = scalar_lea.vmem [#allocation8], %s276
        // Predicated region
        $region41: #{tpu_custom_call.1} parent=31 // pred_check
          %p278 = pneg %p126
        $region42: #{tpu_custom_call.1} parent=31 // pred_check_branch
          %280 = sbr.rel (%p278) target = $region44
        $region43: #{tpu_custom_call.1} parent=31 // pred_region
          %282 = dma.done %s274, 256
        $region44: #{tpu_custom_call.1} parent=31 // pred_fallthru
          _
        %s283 = sand.u32 %s49, 1
        %s284 = scalar_lea.sflag [#allocation4], %s283
        %s285 = sand.u32 %s49, 1
        %s286 = smul.addr %s285, 16
        %s287 = scalar_lea.vmem [#allocation3], %s286
        %p288 = pneg %p62
        %p289 = pneg %p59
        %s290 = sand.u32 %s23, 1
        %s291 = scalar_lea.sflag [#allocation7], %s290
        %s292 = sand.u32 %s81, 1
        %s293 = smul.addr %s292, 16
        %s294 = scalar_lea.vmem [#allocation6], %s293
        %p295 = pneg %p94
        %p296 = pneg %p91
        %s297 = sand.u32 %s23, 1
        %s298 = scalar_lea.sflag [#allocation7], %s297
        %s299 = sand.u32 %s113, 1
        %s300 = smul.addr %s299, 16
        %s301 = scalar_lea.vmem [#allocation8], %s300
        %p302 = pneg %p126
        %p303 = pneg %p123
        %p304 = pneg %p152
        %p305 = pneg %p149
        %s306 = sand.u32 %s139, 1
        %s307 = scalar_lea.sflag [#allocation5], %s306
        %s308 = sand.u32 %s139, 1
        %s309 = smul.addr %s308, 8
        %s310 = scalar_lea.vmem [#allocation9], %s309
        %s311 = sadd.s32 %s27, %s28
        %p312 = scmp.lt.s32.totalorder %s311, 0
        %s313 = scalar_select %p312, %s311, 0
        %s314 = smul.u32 2, %s313
        %s315 = sadd.s32 %s27, %s28
        %p316 = scmp.lt.s32.totalorder %s315, 0
        %s317 = scalar_select %p316, %s315, 0
        %s318 = smul.u32 2, %s317
        %s319 = sadd.s32 %s27, %s28
        %p320 = scmp.lt.s32.totalorder %s319, 0
        %s321 = scalar_select %p320, %s319, 0
        %s322 = smul.u32 2, %s321
        %p323 = scmp.eq.s32.totalorder %s28, 0
        // Predicated region
        $region45: #{tpu_custom_call.1} parent=31 // pred_check
          %p324 = pneg %p323
        $region46: #{tpu_custom_call.1} parent=31 // pred_check_branch
          %326 = sbr.rel (%p324) target = $region48
        $region47: #{tpu_custom_call.1} parent=31 // pred_region
          %327 = vst [vmem:[#allocation2] sm:$0xff] 0.0
        $region48: #{tpu_custom_call.1} parent=31 // pred_fallthru
          _
        %v328 = vld [vmem:[%s257] sm:$0xff]
        %v329 = vld [vmem:[%s257 + $0x8] sm:$0xff]
        %v330 = vld [vmem:[%s267] sm:$0xff]
        %v331 = vld [vmem:[%s267 + $0x8] sm:$0xff]
        %v332 = vld [vmem:[%s277] sm:$0xff]
        %v333 = vld [vmem:[%s277 + $0x8] sm:$0xff]
        %v334 = vsub.f32 %v328, %v330
        %v335 = vsub.f32 %v329, %v331
        %s336 = sadd.s32 %s27, %s28
        %s337 = smul.u32 %s336, 16
        %v338 = vlaneseq
        %v339 = vshrl.u32 %v338, 7
        %v340 = vadd.s32 %v339, 8
        %v341 = vstv %s337
        %v342 = vadd.s32 %v339, %v341
        %v343 = vadd.s32 %v340, %v341
        %vm344 = vcmp.lt.s32.totalorder %v342, 16
        %vm345 = vcmp.lt.s32.totalorder %v343, 16
        %v346 = vsel %vm344, %v334, 0.0
        %v347 = vsel %vm345, %v335, 0.0
        %v348 = vsel %vm344, %v332, 0.0
        %v349 = vsel %vm345, %v333, 0.0
        %v350 = vmul.f32 %v346, %v346
        %v351 = vmul.f32 %v347, %v347
        %v352 = vmul.f32 %v348, 1.442695
        %v353 = vpow.pop %v352
        %v354 = vmul.f32 %v349, 1.442695
        %v355 = vpow.pop %v354
        %v356 = vmul.f32 %v353, 2.0
        %v357 = vmul.f32 %v355, 2.0
        %v358 = vadd.f32 %v356, 1e-06
        %v359 = vadd.f32 %v357, 1e-06
        %v360 = vrcp.pop %v358
        %v361 = vmul.f32 %v358, %v360
        %v362 = vsub.f32 1.0, %v361
        %v363 = vmul.f32 %v360, %v362
        %v364 = vadd.f32 %v360, %v363
        %vm365 = vweird.f32 %v358
        %vm366 = vweird.f32 %v360
        %vm367 = vmor %vm365, %vm366
        %v368 = vsel %vm367, %v360, %v364
        %v369 = vand.u32 2147483647, %v358
        %vm370 = vcmp.eq.f32.partialorder %v369, 8.507059e+37
        %v371 = vand.u32 %v358, 2147483648
        %v372 = vor.u32 1.1754944e-38, %v371
        %v373 = vsel %vm370, %v372, %v368
        %v374 = vrcp.pop %v359
        %v375 = vmul.f32 %v359, %v374
        %v376 = vsub.f32 1.0, %v375
        %v377 = vmul.f32 %v374, %v376
        %v378 = vadd.f32 %v374, %v377
        %vm379 = vweird.f32 %v359
        %vm380 = vweird.f32 %v374
        %vm381 = vmor %vm379, %vm380
        %v382 = vsel %vm381, %v374, %v378
        %v383 = vand.u32 2147483647, %v359
        %vm384 = vcmp.eq.f32.partialorder %v383, 8.507059e+37
        %v385 = vand.u32 %v359, 2147483648
        %v386 = vor.u32 1.1754944e-38, %v385
        %v387 = vsel %vm384, %v386, %v382
        %v388 = vmul.f32 %v350, %v373
        %v389 = vmul.f32 %v351, %v387
        %v390 = vadd.f32 %v388, %v348
        %v391 = vadd.f32 %v389, %v349
        %v392 = vld [vmem:[#allocation2] sm:$0xff]
        %v393 = vadd.f32 %v390, %v391
        %v394 = vadd.f32 %v392, %v393
        %395 = vst [vmem:[#allocation2] sm:$0xff] %v394
        // Predicated region
        $region49: #{tpu_custom_call.1} parent=31 // pred_check
          %p396 = pneg %p323
        $region50: #{tpu_custom_call.1} parent=31 // pred_check_branch
          %398 = sbr.rel (%p396) target = $region52
        $region51: #{tpu_custom_call.1} parent=31 // pred_region
          %v399 = vld [vmem:[#allocation2] sm:$0xff]
          %400 = vst [vmem:[%s310] sm:$0xff] %v399
        $region52: #{tpu_custom_call.1} parent=31 // pred_fallthru
          _
        %s401 = sand.u32 %s139, 1
        %s402 = scalar_lea.sflag [#allocation5], %s401
        %s403 = sand.u32 %s139, 1
        %s404 = smul.addr %s403, 8
        %s405 = scalar_lea.vmem [#allocation9], %s404
        // Predicated region
        $region53: #{tpu_custom_call.1} parent=31 // pred_check
          %p406 = pneg %p149
        $region54: #{tpu_custom_call.1} parent=31 // pred_check_branch
          %408 = sbr.rel (%p406) target = $region56
        $region55: #{tpu_custom_call.1} parent=31 // pred_region
          %410 = vsyncadd %s402, 0
          %s411 = smul.addr %s27, 8
          %s412 = scalar_lea.hbm %s3, %s411
          %s414 = sshll.u32 %s405, 4
          %s415 = int_to_ptr.vmem [resolvable:$true] %s414
          %s416 = sshll.u32 %s412, 4
          %s417 = int_to_ptr.hbm [resolvable:$true] %s416
          %419 = dma.vmem_to_hbm [thread:$0]  %s415, 128, %s417, %s402
        $region56: #{tpu_custom_call.1} parent=31 // pred_fallthru
          _
      $region32: #{tpu_custom_call.1} parent=5 // pred_fallthru
        _
      %p420 = scmp.le.s32.totalorder 2, %s18
      // Predicated region
      $region57: #{tpu_custom_call.1} parent=5 // pred_check
        %p421 = pneg %p420
      $region58: #{tpu_custom_call.1} parent=5 // pred_check_branch
        %423 = sbr.rel (%p421) target = $region60
      $region59: #{tpu_custom_call.1} parent=5 // pred_region
        %s424 = ssub.s32 %s18, 2
        // Predicated region
        $region61: #{tpu_custom_call.1} parent=59 // pred_check
          %p425 = pneg %p155
        $region62: #{tpu_custom_call.1} parent=59 // pred_check_branch
          %427 = sbr.rel (%p425) target = $region64
        $region63: #{tpu_custom_call.1} parent=59 // pred_region
          %s428 = sand.u32 %s140, 1
          %s429 = scalar_lea.sflag [#allocation5], %s428
          %s430 = sand.u32 %s140, 1
          %s431 = smul.addr %s430, 8
          %s432 = scalar_lea.vmem [#allocation9], %s431
          %434 = dma.done %s429, 128
        $region64: #{tpu_custom_call.1} parent=59 // pred_fallthru
          _
      $region60: #{tpu_custom_call.1} parent=5 // pred_fallthru
        _
    $region6: #{tpu_custom_call.1} parent=1 // loop_footer
      %s22 = sadd.s32 1, %s18
    $region7: #{tpu_custom_call.1} parent=1 // loop_footer_branch
      %17 = sbr.rel target = $region3
    $region8: #{tpu_custom_call.1} parent=1 // loop_exit
      _
    %435 = vsyncpa [#allocation4], 1
    %s436 = scalar_lea.sflag [#allocation4], 1
    %437 = vsyncpa %s436, 1
    %438 = vsyncpa [#allocation7], 1
    %s439 = scalar_lea.sflag [#allocation7], 1
    %440 = vsyncpa %s439, 1
    %441 = vsyncpa [#allocation5], 1
    %s442 = scalar_lea.sflag [#allocation5], 1
    %443 = vsyncpa %s442, 1

</llo_original>
